<compile_context>
chip_gen: v7x
topology: tpu7x:2x2x1
jax: 0.10.0
libtpu: 0.0.40
codegen_flags: <defaults>
</compile_context>

<pallas_src>
import functools

import jax
import jax.numpy as jnp
from jax import lax
from jax.experimental import pallas as pl
from jax.experimental.pallas import tpu as pltpu


def _round_up(a, b):
    return (a + b - 1) // b * b


def _gap_kernel(num_heads, d_pad, approx_recip,
                x_ref, w_in_ref, b_in_ref, wo_ref, bo_ref, batch_ref,
                out_ref, attn_ref):
    """Fused self-attention (PyTorch MultiheadAttention semantics, q=k=v=x over
    ALL nodes, matching the module) + global_add_pool, one kernel invocation."""
    f32 = jnp.float32
    x = x_ref[...]                      # (N, H_pad), compute dtype (f32 or bf16)
    cdt = x.dtype
    n = x.shape[0]
    h_pad = x.shape[1]

    # Fused Q/K/V projection: one MXU pass with a 3*H_pad-lane-wide output,
    # f32 accumulation, f32 bias add.  Softmax scale is already folded into
    # the Q block of the weight/bias in the wrapper.
    qkv = jnp.dot(x, w_in_ref[...], preferred_element_type=f32) + b_in_ref[...]
    q = qkv[:, :h_pad]
    k = qkv[:, h_pad:2 * h_pad]
    v = qkv[:, 2 * h_pad:]

    # Per-head scaled dot-product attention.  The head loop is unrolled at trace
    # time; each head writes into a slice of one preallocated VMEM scratch
    # (no list + concatenate).
    for h in range(num_heads):
        lo = h * d_pad
        qh = q[:, lo:lo + d_pad].astype(cdt)
        kh = k[:, lo:lo + d_pad].astype(cdt)
        vh = v[:, lo:lo + d_pad].astype(cdt)
        # q @ k^T without an explicit transpose: contract last dim vs last dim.
        s = lax.dot_general(qh, kh, (((1,), (1,)), ((), ())),
                            preferred_element_type=f32)            # (N, N) f32
        m = jnp.max(s, axis=-1, keepdims=True)
        p = jnp.exp(s - m)
        denom = jnp.sum(p, axis=-1, keepdims=True)
        p = p * pl.reciprocal(denom, approx=approx_recip)           # EUP slot
        attn_ref[:, lo:lo + d_pad] = jnp.dot(p.astype(cdt), vh,
                                             preferred_element_type=f32)

    # Output projection: one lane-dense matmul over all heads (weight is
    # pre-transposed in the wrapper).
    out = jnp.dot(attn_ref[...].astype(cdt), wo_ref[...],
                  preferred_element_type=f32) + bo_ref[...]          # (N, H_pad)

    # global_add_pool: build the (G, N) one-hot in-kernel from the graph-id row
    # (no O(G*N) HBM traffic) and contract over nodes.
    g = out_ref.shape[0]
    gids = lax.broadcasted_iota(jnp.int32, (g, n), 0)
    onehot = (batch_ref[...] == gids).astype(f32)                    # (G, N)
    out_ref[...] = jnp.dot(onehot, out,
                           preferred_element_type=f32).astype(out_ref.dtype)


def _prepare_params(in_proj_w, in_proj_b, out_proj_w, out_proj_b, num_heads,
                    lane=128):
    """Fold the softmax scale into Wq/bq, zero-pad the feature dim *per head* so
    H_pad is a multiple of the lane width (numerically exact), pre-transpose, and
    stack Q/K/V into a single fused in-projection weight.  In a real model this
    runs once at parameter-load time."""
    H = out_proj_w.shape[0]
    d = H // num_heads
    H_pad = _round_up(H, lane)
    if H_pad % num_heads == 0:
        d_pad = H_pad // num_heads
    else:
        # TODO(synk): handle num_heads that do not divide the lane-padded width.
        H_pad, d_pad = H, d

    scale = 1.0 / (d ** 0.5)
    wq = in_proj_w[0 * H:1 * H] * scale
    wk = in_proj_w[1 * H:2 * H]
    wv = in_proj_w[2 * H:3 * H]
    bq = in_proj_b[0 * H:1 * H] * scale
    bk = in_proj_b[1 * H:2 * H]
    bv = in_proj_b[2 * H:3 * H]

    def pad_head(w, b):
        # w: (H_out = nh*d, H_in) torch Linear weight.  Pad out-features per head
        # (d -> d_pad) and in-features (H -> H_pad) with zeros.
        w3 = w.reshape(num_heads, d, H)
        w3 = jnp.pad(w3, ((0, 0), (0, d_pad - d), (0, H_pad - H)))
        b2 = jnp.pad(b.reshape(num_heads, d), ((0, 0), (0, d_pad - d)))
        return w3.reshape(num_heads * d_pad, H_pad), b2.reshape(num_heads * d_pad)

    wq, bq = pad_head(wq, bq)
    wk, bk = pad_head(wk, bk)
    wv, bv = pad_head(wv, bv)
    w_in_t = jnp.concatenate([wq, wk, wv], axis=0).T          # (H_pad, 3*H_pad)
    b_in = jnp.concatenate([bq, bk, bv]).reshape(1, 3 * H_pad)

    # Output projection: pad in-features per head and out-features to H_pad.
    wo3 = out_proj_w.reshape(H, num_heads, d)
    wo3 = jnp.pad(wo3, ((0, H_pad - H), (0, 0), (0, d_pad - d)))
    wo_t = wo3.reshape(H_pad, num_heads * d_pad).T             # (H_pad, H_pad)
    bo = jnp.pad(out_proj_b, (0, H_pad - H)).reshape(1, H_pad)
    return w_in_t, b_in, wo_t, bo, H_pad, d_pad


def global_attention_pooling(x, batch, in_proj_w, in_proj_b, out_proj_w,
                             out_proj_b, *, num_heads, num_graphs,
                             compute_dtype=jnp.float32):
    N, H = x.shape
    assert H % num_heads == 0
    w_in_t, b_in, wo_t, bo, H_pad, d_pad = _prepare_params(
        in_proj_w, in_proj_b, out_proj_w, out_proj_b, num_heads)

    is_bf16 = jnp.dtype(compute_dtype) == jnp.dtype(jnp.bfloat16)
    x_pad = jnp.pad(x, ((0, 0), (0, H_pad - H))).astype(compute_dtype)
    w_in_t = w_in_t.astype(compute_dtype)   # bf16 halves weight HBM traffic
    wo_t = wo_t.astype(compute_dtype)
    batch_row = batch.astype(jnp.int32).reshape(1, N)

    kernel = functools.partial(_gap_kernel, num_heads, d_pad, bool(is_bf16))
    vmem = pl.BlockSpec(memory_space=pltpu.MemorySpace.VMEM)
    pooled = pl.pallas_call(
        kernel,
        out_shape=jax.ShapeDtypeStruct((num_graphs, H_pad), jnp.float32),
        in_specs=[vmem] * 6,
        out_specs=vmem,
        scratch_shapes=[pltpu.VMEM((N, H_pad), jnp.float32)],
        compiler_params=pltpu.CompilerParams(
            vmem_limit_bytes=32 * 1024 * 1024),
    )(x_pad, w_in_t, b_in, wo_t, bo, batch_row)
    return pooled[:, :H]


def _reference(x, batch, params, *, num_heads, num_graphs):
    """Pure-JAX reference mirroring torch.nn.MultiheadAttention (q=k=v=x,
    unbatched (L, E) input) followed by global_add_pool."""
    H = x.shape[-1]
    d = H // num_heads
    q = x @ params["wq"].T + params["bq"]
    k = x @ params["wk"].T + params["bk"]
    v = x @ params["wv"].T + params["bv"]
    qh = q.reshape(-1, num_heads, d).transpose(1, 0, 2) / jnp.sqrt(d)
    kh = k.reshape(-1, num_heads, d).transpose(1, 0, 2)
    vh = v.reshape(-1, num_heads, d).transpose(1, 0, 2)
    s = jnp.einsum("hqd,hkd->hqk", qh, kh)
    p = jax.nn.softmax(s, axis=-1)
    o = jnp.einsum("hqk,hkd->hqd", p, vh).transpose(1, 0, 2).reshape(-1, H)
    o = o @ params["wo"].T + params["bo"]
    onehot = (batch[None, :] == jnp.arange(num_graphs)[:, None]).astype(jnp.float32)
    return onehot @ o


if __name__ == "__main__":
    N, H, NUM_HEADS, G = 8, 32, 4, 2   # nodes, hidden_channels, heads, graphs

    key = jax.random.PRNGKey(0)
    kx, kin, kbin, kout, kbout = jax.random.split(key, 5)

    x = jax.random.normal(kx, (N, H), dtype=jnp.float32)
    batch = jnp.array([0, 0, 0, 0, 1, 1, 1, 1], dtype=jnp.int32)

    # Synthetic parameters matching nn.MultiheadAttention shapes:
    # in_proj_weight (3H, H), in_proj_bias (3H,), out_proj (H, H) + (H,).
    scale0 = 1.0 / (H ** 0.5)
    in_proj_w = jax.random.normal(kin, (3 * H, H), dtype=jnp.float32) * scale0
    in_proj_b = jax.random.normal(kbin, (3 * H,), dtype=jnp.float32) * 0.01
    out_proj_w = jax.random.normal(kout, (H, H), dtype=jnp.float32) * scale0
    out_proj_b = jax.random.normal(kbout, (H,), dtype=jnp.float32) * 0.01

    ref_params = {
        "wq": in_proj_w[0 * H:1 * H], "wk": in_proj_w[1 * H:2 * H],
        "wv": in_proj_w[2 * H:3 * H],
        "bq": in_proj_b[0 * H:1 * H], "bk": in_proj_b[1 * H:2 * H],
        "bv": in_proj_b[2 * H:3 * H],
        "wo": out_proj_w, "bo": out_proj_b,
    }
    ref = _reference(x, batch, ref_params, num_heads=NUM_HEADS, num_graphs=G)

    # Exact-semantics f32 path.
    out32 = global_attention_pooling(
        x, batch, in_proj_w, in_proj_b, out_proj_w, out_proj_b,
        num_heads=NUM_HEADS, num_graphs=G, compute_dtype=jnp.float32)
    out32 = jax.block_until_ready(out32)
    assert out32.shape == (G, H)
    assert jnp.allclose(out32, ref, atol=1e-4, rtol=1e-4), "f32 mismatch vs reference"

    # bf16-operand / f32-accumulate MXU fast path (tolerance bounded by bf16
    # operand quantization, not by the kernel structure).
    out16 = global_attention_pooling(
        x, batch, in_proj_w, in_proj_b, out_proj_w, out_proj_b,
        num_heads=NUM_HEADS, num_graphs=G, compute_dtype=jnp.bfloat16)
    out16 = jax.block_until_ready(out16)
    assert out16.shape == (G, H)
    assert jnp.allclose(out16, ref, atol=5e-2, rtol=5e-2), "bf16 mismatch vs reference"

    print("KERNEL_OK")
</pallas_src>

<mosaic_0001>
module attributes {stable_mosaic.version = 11 : i64} {
  func.func @_gap_kernel(%arg0: memref<8x128xf32, #tpu.memory_space<vmem>>, %arg1: memref<128x384xf32, #tpu.memory_space<vmem>>, %arg2: memref<1x384xf32, #tpu.memory_space<vmem>>, %arg3: memref<128x128xf32, #tpu.memory_space<vmem>>, %arg4: memref<1x128xf32, #tpu.memory_space<vmem>>, %arg5: memref<1x8xi32, #tpu.memory_space<vmem>>, %arg6: memref<2x128xf32, #tpu.memory_space<vmem>>, %arg7: memref<8x128xf32, #tpu.memory_space<vmem>>) attributes {dimension_semantics = [], scalar_prefetch = 0 : i64, scratch_operands = 1 : i64, tpu.core_type = #tpu.core_type<tc>} {
    %c0 = arith.constant 0 : index
    %c0_0 = arith.constant 0 : index
    %0 = vector.load %arg0[%c0, %c0_0] : memref<8x128xf32, #tpu.memory_space<vmem>>, vector<8x128xf32>
    %c0_1 = arith.constant 0 : index
    %c0_2 = arith.constant 0 : index
    %1 = vector.load %arg1[%c0_1, %c0_2] : memref<128x384xf32, #tpu.memory_space<vmem>>, vector<128x384xf32>
    %cst = arith.constant dense<0.000000e+00> : vector<8x384xf32>
    %2 = tpu.matmul %0, %1, %cst {dimension_numbers = #tpu.dot_dimension_numbers<[1], [0], [0], [1], [0, 0, 1, 1], [], []>} : vector<8x128xf32>, vector<128x384xf32>, vector<8x384xf32> -> vector<8x384xf32>
    %c0_3 = arith.constant 0 : index
    %c0_4 = arith.constant 0 : index
    %3 = vector.load %arg2[%c0_3, %c0_4] : memref<1x384xf32, #tpu.memory_space<vmem>>, vector<1x384xf32>
    %4 = vector.broadcast %3 : vector<1x384xf32> to vector<8x384xf32>
    %5 = arith.addf %2, %4 : vector<8x384xf32>
    %6 = vector.extract_strided_slice %5 {offsets = [0, 0], sizes = [8, 128], strides = [1, 1]} : vector<8x384xf32> to vector<8x128xf32>
    %7 = vector.extract_strided_slice %5 {offsets = [0, 128], sizes = [8, 128], strides = [1, 1]} : vector<8x384xf32> to vector<8x128xf32>
    %8 = vector.extract_strided_slice %5 {offsets = [0, 256], sizes = [8, 128], strides = [1, 1]} : vector<8x384xf32> to vector<8x128xf32>
    %9 = vector.extract_strided_slice %6 {offsets = [0, 0], sizes = [8, 32], strides = [1, 1]} : vector<8x128xf32> to vector<8x32xf32>
    %10 = vector.extract_strided_slice %7 {offsets = [0, 0], sizes = [8, 32], strides = [1, 1]} : vector<8x128xf32> to vector<8x32xf32>
    %11 = vector.extract_strided_slice %8 {offsets = [0, 0], sizes = [8, 32], strides = [1, 1]} : vector<8x128xf32> to vector<8x32xf32>
    %cst_5 = arith.constant dense<0.000000e+00> : vector<8x8xf32>
    %12 = tpu.matmul %9, %10, %cst_5 {dimension_numbers = #tpu.dot_dimension_numbers<[1], [1], [0], [0], [0, 0, 1, 0], [], []>} : vector<8x32xf32>, vector<8x32xf32>, vector<8x8xf32> -> vector<8x8xf32>
    %cst_6 = arith.constant dense<0xFF800000> : vector<8xf32>
    %13 = vector.multi_reduction <maximumf>, %12, %cst_6 [1] : vector<8x8xf32> to vector<8xf32>
    %14 = vector.shape_cast %13 : vector<8xf32> to vector<8x1xf32>
    %15 = vector.broadcast %14 : vector<8x1xf32> to vector<8x8xf32>
    %16 = arith.subf %12, %15 : vector<8x8xf32>
    %17 = math.exp %16 : vector<8x8xf32>
    %cst_7 = arith.constant dense<0.000000e+00> : vector<8xf32>
    %18 = vector.multi_reduction <add>, %17, %cst_7 [1] : vector<8x8xf32> to vector<8xf32>
    %19 = vector.shape_cast %18 : vector<8xf32> to vector<8x1xf32>
    %20 = tpu.reciprocal %19 : vector<8x1xf32> -> vector<8x1xf32>
    %21 = vector.broadcast %20 : vector<8x1xf32> to vector<8x8xf32>
    %22 = arith.mulf %17, %21 : vector<8x8xf32>
    %cst_8 = arith.constant dense<0.000000e+00> : vector<8x32xf32>
    %23 = tpu.matmul %22, %11, %cst_8 {dimension_numbers = #tpu.dot_dimension_numbers<[1], [0], [0], [1], [0, 0, 1, 1], [], []>} : vector<8x8xf32>, vector<8x32xf32>, vector<8x32xf32> -> vector<8x32xf32>
    %c0_9 = arith.constant 0 : index
    %c0_10 = arith.constant 0 : index
    %24 = vector.load %arg7[%c0_9, %c0_10] : memref<8x128xf32, #tpu.memory_space<vmem>>, vector<8x32xf32>
    tpu.vector_store %arg7[%c0_9, %c0_10], %23 {strides = array<i32>} : memref<8x128xf32, #tpu.memory_space<vmem>>, vector<8x32xf32>,
    %25 = vector.extract_strided_slice %6 {offsets = [0, 32], sizes = [8, 32], strides = [1, 1]} : vector<8x128xf32> to vector<8x32xf32>
    %26 = vector.extract_strided_slice %7 {offsets = [0, 32], sizes = [8, 32], strides = [1, 1]} : vector<8x128xf32> to vector<8x32xf32>
    %27 = vector.extract_strided_slice %8 {offsets = [0, 32], sizes = [8, 32], strides = [1, 1]} : vector<8x128xf32> to vector<8x32xf32>
    %cst_11 = arith.constant dense<0.000000e+00> : vector<8x8xf32>
    %28 = tpu.matmul %25, %26, %cst_11 {dimension_numbers = #tpu.dot_dimension_numbers<[1], [1], [0], [0], [0, 0, 1, 0], [], []>} : vector<8x32xf32>, vector<8x32xf32>, vector<8x8xf32> -> vector<8x8xf32>
    %cst_12 = arith.constant dense<0xFF800000> : vector<8xf32>
    %29 = vector.multi_reduction <maximumf>, %28, %cst_12 [1] : vector<8x8xf32> to vector<8xf32>
    %30 = vector.shape_cast %29 : vector<8xf32> to vector<8x1xf32>
    %31 = vector.broadcast %30 : vector<8x1xf32> to vector<8x8xf32>
    %32 = arith.subf %28, %31 : vector<8x8xf32>
    %33 = math.exp %32 : vector<8x8xf32>
    %cst_13 = arith.constant dense<0.000000e+00> : vector<8xf32>
    %34 = vector.multi_reduction <add>, %33, %cst_13 [1] : vector<8x8xf32> to vector<8xf32>
    %35 = vector.shape_cast %34 : vector<8xf32> to vector<8x1xf32>
    %36 = tpu.reciprocal %35 : vector<8x1xf32> -> vector<8x1xf32>
    %37 = vector.broadcast %36 : vector<8x1xf32> to vector<8x8xf32>
    %38 = arith.mulf %33, %37 : vector<8x8xf32>
    %cst_14 = arith.constant dense<0.000000e+00> : vector<8x32xf32>
    %39 = tpu.matmul %38, %27, %cst_14 {dimension_numbers = #tpu.dot_dimension_numbers<[1], [0], [0], [1], [0, 0, 1, 1], [], []>} : vector<8x8xf32>, vector<8x32xf32>, vector<8x32xf32> -> vector<8x32xf32>
    %c0_15 = arith.constant 0 : index
    %c32 = arith.constant 32 : index
    %40 = vector.load %arg7[%c0_15, %c32] : memref<8x128xf32, #tpu.memory_space<vmem>>, vector<8x32xf32>
    tpu.vector_store %arg7[%c0_15, %c32], %39 {strides = array<i32>} : memref<8x128xf32, #tpu.memory_space<vmem>>, vector<8x32xf32>,
    %41 = vector.extract_strided_slice %6 {offsets = [0, 64], sizes = [8, 32], strides = [1, 1]} : vector<8x128xf32> to vector<8x32xf32>
    %42 = vector.extract_strided_slice %7 {offsets = [0, 64], sizes = [8, 32], strides = [1, 1]} : vector<8x128xf32> to vector<8x32xf32>
    %43 = vector.extract_strided_slice %8 {offsets = [0, 64], sizes = [8, 32], strides = [1, 1]} : vector<8x128xf32> to vector<8x32xf32>
    %cst_16 = arith.constant dense<0.000000e+00> : vector<8x8xf32>
    %44 = tpu.matmul %41, %42, %cst_16 {dimension_numbers = #tpu.dot_dimension_numbers<[1], [1], [0], [0], [0, 0, 1, 0], [], []>} : vector<8x32xf32>, vector<8x32xf32>, vector<8x8xf32> -> vector<8x8xf32>
    %cst_17 = arith.constant dense<0xFF800000> : vector<8xf32>
    %45 = vector.multi_reduction <maximumf>, %44, %cst_17 [1] : vector<8x8xf32> to vector<8xf32>
    %46 = vector.shape_cast %45 : vector<8xf32> to vector<8x1xf32>
    %47 = vector.broadcast %46 : vector<8x1xf32> to vector<8x8xf32>
    %48 = arith.subf %44, %47 : vector<8x8xf32>
    %49 = math.exp %48 : vector<8x8xf32>
    %cst_18 = arith.constant dense<0.000000e+00> : vector<8xf32>
    %50 = vector.multi_reduction <add>, %49, %cst_18 [1] : vector<8x8xf32> to vector<8xf32>
    %51 = vector.shape_cast %50 : vector<8xf32> to vector<8x1xf32>
    %52 = tpu.reciprocal %51 : vector<8x1xf32> -> vector<8x1xf32>
    %53 = vector.broadcast %52 : vector<8x1xf32> to vector<8x8xf32>
    %54 = arith.mulf %49, %53 : vector<8x8xf32>
    %cst_19 = arith.constant dense<0.000000e+00> : vector<8x32xf32>
    %55 = tpu.matmul %54, %43, %cst_19 {dimension_numbers = #tpu.dot_dimension_numbers<[1], [0], [0], [1], [0, 0, 1, 1], [], []>} : vector<8x8xf32>, vector<8x32xf32>, vector<8x32xf32> -> vector<8x32xf32>
    %c0_20 = arith.constant 0 : index
    %c64 = arith.constant 64 : index
    %56 = vector.load %arg7[%c0_20, %c64] : memref<8x128xf32, #tpu.memory_space<vmem>>, vector<8x32xf32>
    tpu.vector_store %arg7[%c0_20, %c64], %55 {strides = array<i32>} : memref<8x128xf32, #tpu.memory_space<vmem>>, vector<8x32xf32>,
    %57 = vector.extract_strided_slice %6 {offsets = [0, 96], sizes = [8, 32], strides = [1, 1]} : vector<8x128xf32> to vector<8x32xf32>
    %58 = vector.extract_strided_slice %7 {offsets = [0, 96], sizes = [8, 32], strides = [1, 1]} : vector<8x128xf32> to vector<8x32xf32>
    %59 = vector.extract_strided_slice %8 {offsets = [0, 96], sizes = [8, 32], strides = [1, 1]} : vector<8x128xf32> to vector<8x32xf32>
    %cst_21 = arith.constant dense<0.000000e+00> : vector<8x8xf32>
    %60 = tpu.matmul %57, %58, %cst_21 {dimension_numbers = #tpu.dot_dimension_numbers<[1], [1], [0], [0], [0, 0, 1, 0], [], []>} : vector<8x32xf32>, vector<8x32xf32>, vector<8x8xf32> -> vector<8x8xf32>
    %cst_22 = arith.constant dense<0xFF800000> : vector<8xf32>
    %61 = vector.multi_reduction <maximumf>, %60, %cst_22 [1] : vector<8x8xf32> to vector<8xf32>
    %62 = vector.shape_cast %61 : vector<8xf32> to vector<8x1xf32>
    %63 = vector.broadcast %62 : vector<8x1xf32> to vector<8x8xf32>
    %64 = arith.subf %60, %63 : vector<8x8xf32>
    %65 = math.exp %64 : vector<8x8xf32>
    %cst_23 = arith.constant dense<0.000000e+00> : vector<8xf32>
    %66 = vector.multi_reduction <add>, %65, %cst_23 [1] : vector<8x8xf32> to vector<8xf32>
    %67 = vector.shape_cast %66 : vector<8xf32> to vector<8x1xf32>
    %68 = tpu.reciprocal %67 : vector<8x1xf32> -> vector<8x1xf32>
    %69 = vector.broadcast %68 : vector<8x1xf32> to vector<8x8xf32>
    %70 = arith.mulf %65, %69 : vector<8x8xf32>
    %cst_24 = arith.constant dense<0.000000e+00> : vector<8x32xf32>
    %71 = tpu.matmul %70, %59, %cst_24 {dimension_numbers = #tpu.dot_dimension_numbers<[1], [0], [0], [1], [0, 0, 1, 1], [], []>} : vector<8x8xf32>, vector<8x32xf32>, vector<8x32xf32> -> vector<8x32xf32>
    %c0_25 = arith.constant 0 : index
    %c96 = arith.constant 96 : index
    %72 = vector.load %arg7[%c0_25, %c96] : memref<8x128xf32, #tpu.memory_space<vmem>>, vector<8x32xf32>
    tpu.vector_store %arg7[%c0_25, %c96], %71 {strides = array<i32>} : memref<8x128xf32, #tpu.memory_space<vmem>>, vector<8x32xf32>,
    %c0_26 = arith.constant 0 : index
    %c0_27 = arith.constant 0 : index
    %73 = vector.load %arg7[%c0_26, %c0_27] : memref<8x128xf32, #tpu.memory_space<vmem>>, vector<8x128xf32>
    %c0_28 = arith.constant 0 : index
    %c0_29 = arith.constant 0 : index
    %74 = vector.load %arg3[%c0_28, %c0_29] : memref<128x128xf32, #tpu.memory_space<vmem>>, vector<128x128xf32>
    %cst_30 = arith.constant dense<0.000000e+00> : vector<8x128xf32>
    %75 = tpu.matmul %73, %74, %cst_30 {dimension_numbers = #tpu.dot_dimension_numbers<[1], [0], [0], [1], [0, 0, 1, 1], [], []>} : vector<8x128xf32>, vector<128x128xf32>, vector<8x128xf32> -> vector<8x128xf32>
    %c0_31 = arith.constant 0 : index
    %c0_32 = arith.constant 0 : index
    %76 = vector.load %arg4[%c0_31, %c0_32] : memref<1x128xf32, #tpu.memory_space<vmem>>, vector<1x128xf32>
    %77 = vector.broadcast %76 : vector<1x128xf32> to vector<8x128xf32>
    %78 = arith.addf %75, %77 : vector<8x128xf32>
    %79 = tpu.iota {dimensions = array<i32: 0>} : vector<2x8xi32>
    %c0_33 = arith.constant 0 : index
    %c0_34 = arith.constant 0 : index
    %80 = vector.load %arg5[%c0_33, %c0_34] : memref<1x8xi32, #tpu.memory_space<vmem>>, vector<1x8xi32>
    %81 = vector.broadcast %80 : vector<1x8xi32> to vector<2x8xi32>
    %82 = arith.cmpi eq, %81, %79 : vector<2x8xi32>
    %83 = arith.extui %82 : vector<2x8xi1> to vector<2x8xi32>
    %84 = arith.sitofp %83 : vector<2x8xi32> to vector<2x8xf32>
    %cst_35 = arith.constant dense<0.000000e+00> : vector<2x128xf32>
    %85 = tpu.matmul %84, %78, %cst_35 {dimension_numbers = #tpu.dot_dimension_numbers<[1], [0], [0], [1], [0, 0, 1, 1], [], []>} : vector<2x8xf32>, vector<8x128xf32>, vector<2x128xf32> -> vector<2x128xf32>
    %c0_36 = arith.constant 0 : index
    %c0_37 = arith.constant 0 : index
    %86 = vector.load %arg6[%c0_36, %c0_37] : memref<2x128xf32, #tpu.memory_space<vmem>>, vector<2x128xf32>
    tpu.vector_store %arg6[%c0_36, %c0_37], %85 {strides = array<i32>} : memref<2x128xf32, #tpu.memory_space<vmem>>, vector<2x128xf32>,
    return
  }
}

</mosaic_0001>

<llo_original>
// kernel: tpu_custom_call.1
$region0: #{tpu_custom_call.1}
  #allocation0 [shape = 'u32[]', space=smem, size = 0x4, offset = 0x4, fixed_abs, tag = 'smem constant byte address 0x4 - core index']
  #allocation1 [shape = 'u32[144,128]{1,0:T(1,128)}', space=vmem, size = 0x12000, scoped, tag = 'internal scratch']
  #allocation2 [shape = 'f32[8,128]{1,0:T(8,128)}', space=vmem, size = 0x1000, scoped, tag = 'scratch operand']
  %s0 = inlined_call_operand.hbm [shape: f32[8,128], index: 0, kind: input, shape index: {}]
  %s1 = inlined_call_operand.hbm [shape: f32[128,384], index: 1, kind: input, shape index: {}]
  %s2 = inlined_call_operand.vmem [shape: f32[1,384], index: 2, kind: input, shape index: {}]
  %s3 = inlined_call_operand.hbm [shape: f32[128,128], index: 3, kind: input, shape index: {}]
  %s4 = inlined_call_operand.vmem [shape: f32[1,128], index: 4, kind: input, shape index: {}]
  %s5 = inlined_call_operand.vmem [shape: s32[1,8], index: 5, kind: input, shape index: {}]
  %s6 = inlined_call_operand.hbm [shape: f32[2,128], index: 6, kind: output, shape index: {}]
  %s7 = sld [smem:[#allocation0]]
  $region46: #{tpu_custom_call.1} parent=0
    _
  %s9 = ssub.s32 1, %s7
  %s10 = scalar_select 0, %s9, %s7
  $region1: #{tpu_custom_call.1} parent=0
    #allocation3 [shape = 'u8[4096]{0}', space=vmem, size = 0x1000, scoped, tag = 'input window, operand 0, single buffered']
    #allocation4 [shape = 's32[1]{0}', space=sflag, size = 0x4, scoped, tag = 'scoped memory for tpu_custom_call.1']
    #allocation5 [shape = 's32[1]{0}', space=sflag, size = 0x4, scoped, tag = 'scoped memory for tpu_custom_call.1']
    #allocation6 [shape = 'u8[196608]{0}', space=vmem, size = 0x30000, scoped, tag = 'input window, operand 1, single buffered']
    #allocation7 [shape = 's32[1]{0}', space=sflag, size = 0x4, scoped, tag = 'scoped memory for tpu_custom_call.1']
    #allocation8 [shape = 'u8[65536]{0}', space=vmem, size = 0x10000, scoped, tag = 'input window, operand 3, single buffered']
    #allocation9 [shape = 'u8[1024]{0}', space=vmem, size = 0x400, scoped, tag = 'output window, operand 0, single buffered']
    %11 = vsyncpa [#allocation4], 0
    %12 = vsyncpa [#allocation7], 0
    %13 = vsyncpa [#allocation5], 0
    // Predicated region
    $region2: #{tpu_custom_call.1} parent=1 // pred_check
      _
    $region3: #{tpu_custom_call.1} parent=1 // pred_check_branch
      %15 = sbr.rel (0) target = $region5
    $region4: #{tpu_custom_call.1} parent=1 // pred_region
      %s17 = ssub.s32 128, 128
      %18 = vsyncadd [#allocation4], %s17
      %s20 = sshll.u32 [#allocation3], 4
      %s21 = int_to_ptr.vmem [resolvable:$true] %s20
      %23 = dma.hbm_to_vmem [thread:$0]  %s0, 128, %s21, [#allocation4]
    $region5: #{tpu_custom_call.1} parent=1 // pred_fallthru
      _
    // Predicated region
    $region6: #{tpu_custom_call.1} parent=1 // pred_check
      _
    $region7: #{tpu_custom_call.1} parent=1 // pred_check_branch
      %25 = sbr.rel (0) target = $region9
    $region8: #{tpu_custom_call.1} parent=1 // pred_region
      %s27 = ssub.s32 6144, 6144
      %28 = vsyncadd [#allocation7], %s27
      %s29 = sshll.u32 [#allocation6], 4
      %s30 = int_to_ptr.vmem [resolvable:$true] %s29
      %35 = dma.hbm_to_vmem [thread:$0]  %s1, 6144, %s30, [#allocation7], 384, 384, 24
    $region9: #{tpu_custom_call.1} parent=1 // pred_fallthru
      _
    // Predicated region
    $region10: #{tpu_custom_call.1} parent=1 // pred_check
      _
    $region11: #{tpu_custom_call.1} parent=1 // pred_check_branch
      %37 = sbr.rel (0) target = $region13
    $region12: #{tpu_custom_call.1} parent=1 // pred_region
      _
    $region13: #{tpu_custom_call.1} parent=1 // pred_fallthru
      _
    // Predicated region
    $region14: #{tpu_custom_call.1} parent=1 // pred_check
      _
    $region15: #{tpu_custom_call.1} parent=1 // pred_check_branch
      %39 = sbr.rel (0) target = $region17
    $region16: #{tpu_custom_call.1} parent=1 // pred_region
      %s41 = ssub.s32 2048, 2048
      %42 = vsyncadd [#allocation7], %s41
      %s43 = sshll.u32 [#allocation8], 4
      %s44 = int_to_ptr.vmem [resolvable:$true] %s43
      %49 = dma.hbm_to_vmem [thread:$0]  %s3, 2048, %s44, [#allocation7], 128, 128, 8
    $region17: #{tpu_custom_call.1} parent=1 // pred_fallthru
      _
    // Predicated region
    $region18: #{tpu_custom_call.1} parent=1 // pred_check
      _
    $region19: #{tpu_custom_call.1} parent=1 // pred_check_branch
      %51 = sbr.rel (0) target = $region21
    $region20: #{tpu_custom_call.1} parent=1 // pred_region
      _
    $region21: #{tpu_custom_call.1} parent=1 // pred_fallthru
      _
    // Predicated region
    $region22: #{tpu_custom_call.1} parent=1 // pred_check
      _
    $region23: #{tpu_custom_call.1} parent=1 // pred_check_branch
      %53 = sbr.rel (0) target = $region25
    $region24: #{tpu_custom_call.1} parent=1 // pred_region
      _
    $region25: #{tpu_custom_call.1} parent=1 // pred_fallthru
      _
    // Predicated region
    $region26: #{tpu_custom_call.1} parent=1 // pred_check
      _
    $region27: #{tpu_custom_call.1} parent=1 // pred_check_branch
      %55 = sbr.rel (0) target = $region29
    $region28: #{tpu_custom_call.1} parent=1 // pred_region
      %56 = dma.done [#allocation4], 128
    $region29: #{tpu_custom_call.1} parent=1 // pred_fallthru
      _
    // Predicated region
    $region30: #{tpu_custom_call.1} parent=1 // pred_check
      _
    $region31: #{tpu_custom_call.1} parent=1 // pred_check_branch
      %58 = sbr.rel (0) target = $region33
    $region32: #{tpu_custom_call.1} parent=1 // pred_region
      %59 = dma.done [#allocation7], 6144
    $region33: #{tpu_custom_call.1} parent=1 // pred_fallthru
      _
    // Predicated region
    $region34: #{tpu_custom_call.1} parent=1 // pred_check
      _
    $region35: #{tpu_custom_call.1} parent=1 // pred_check_branch
      %61 = sbr.rel (0) target = $region37
    $region36: #{tpu_custom_call.1} parent=1 // pred_region
      %62 = dma.done [#allocation7], 2048
    $region37: #{tpu_custom_call.1} parent=1 // pred_fallthru
      _
    %v63 = vld [vmem:[#allocation3] sm:$0xff]
    %v64 = vld [vmem:[#allocation6] sm:$0xff]
    %v65 = vld [vmem:[#allocation6 + $0x8] sm:$0xff]
    %v66 = vld [vmem:[#allocation6 + $0x10] sm:$0xff]
    %v67 = vld [vmem:[#allocation6 + $0x18] sm:$0xff]
    %v68 = vld [vmem:[#allocation6 + $0x20] sm:$0xff]
    %v69 = vld [vmem:[#allocation6 + $0x28] sm:$0xff]
    %v70 = vld [vmem:[#allocation6 + $0x30] sm:$0xff]
    %v71 = vld [vmem:[#allocation6 + $0x38] sm:$0xff]
    %v72 = vld [vmem:[#allocation6 + $0x40] sm:$0xff]
    %v73 = vld [vmem:[#allocation6 + $0x48] sm:$0xff]
    %v74 = vld [vmem:[#allocation6 + $0x50] sm:$0xff]
    %v75 = vld [vmem:[#allocation6 + $0x58] sm:$0xff]
    %v76 = vld [vmem:[#allocation6 + $0x60] sm:$0xff]
    %v77 = vld [vmem:[#allocation6 + $0x68] sm:$0xff]
    %v78 = vld [vmem:[#allocation6 + $0x70] sm:$0xff]
    %v79 = vld [vmem:[#allocation6 + $0x78] sm:$0xff]
    %v80 = vld [vmem:[#allocation6 + $0x80] sm:$0xff]
    %v81 = vld [vmem:[#allocation6 + $0x88] sm:$0xff]
    %v82 = vld [vmem:[#allocation6 + $0x90] sm:$0xff]
    %v83 = vld [vmem:[#allocation6 + $0x98] sm:$0xff]
    %v84 = vld [vmem:[#allocation6 + $0xa0] sm:$0xff]
    %v85 = vld [vmem:[#allocation6 + $0xa8] sm:$0xff]
    %v86 = vld [vmem:[#allocation6 + $0xb0] sm:$0xff]
    %v87 = vld [vmem:[#allocation6 + $0xb8] sm:$0xff]
    %v88 = vld [vmem:[#allocation6 + $0xc0] sm:$0xff]
    %v89 = vld [vmem:[#allocation6 + $0xc8] sm:$0xff]
    %v90 = vld [vmem:[#allocation6 + $0xd0] sm:$0xff]
    %v91 = vld [vmem:[#allocation6 + $0xd8] sm:$0xff]
    %v92 = vld [vmem:[#allocation6 + $0xe0] sm:$0xff]
    %v93 = vld [vmem:[#allocation6 + $0xe8] sm:$0xff]
    %v94 = vld [vmem:[#allocation6 + $0xf0] sm:$0xff]
    %v95 = vld [vmem:[#allocation6 + $0xf8] sm:$0xff]
    %v96 = vld [vmem:[#allocation6 + $0x100] sm:$0xff]
    %v97 = vld [vmem:[#allocation6 + $0x108] sm:$0xff]
    %v98 = vld [vmem:[#allocation6 + $0x110] sm:$0xff]
    %v99 = vld [vmem:[#allocation6 + $0x118] sm:$0xff]
    %v100 = vld [vmem:[#allocation6 + $0x120] sm:$0xff]
    %v101 = vld [vmem:[#allocation6 + $0x128] sm:$0xff]
    %v102 = vld [vmem:[#allocation6 + $0x130] sm:$0xff]
    %v103 = vld [vmem:[#allocation6 + $0x138] sm:$0xff]
    %v104 = vld [vmem:[#allocation6 + $0x140] sm:$0xff]
    %v105 = vld [vmem:[#allocation6 + $0x148] sm:$0xff]
    %v106 = vld [vmem:[#allocation6 + $0x150] sm:$0xff]
    %v107 = vld [vmem:[#allocation6 + $0x158] sm:$0xff]
    %v108 = vld [vmem:[#allocation6 + $0x160] sm:$0xff]
    %v109 = vld [vmem:[#allocation6 + $0x168] sm:$0xff]
    %v110 = vld [vmem:[#allocation6 + $0x170] sm:$0xff]
    %v111 = vld [vmem:[#allocation6 + $0x178] sm:$0xff]
    %v112 = vld [vmem:[%s2] sm:$0x7]
    %v114 = vlaneseq
    %v115 = vshrl.u32 %v114, 7
    %v116 = vsub.s32 0, %v115
    %v117 = vrot.slane %v112, %v116
    %v118 = vlaneseq
    %v119 = vshrl.u32 %v118, 7
    %v120 = vsub.s32 1, %v119
    %v121 = vrot.slane %v112, %v120
    %v122 = vlaneseq
    %v123 = vshrl.u32 %v122, 7
    %v124 = vsub.s32 2, %v123
    %v125 = vrot.slane %v112, %v124
    %129 = vmatprep.subr.mxu0 %v65
    %130 = vmatpush1.msra.mxu0 %v64
    %131 = vmatprep.subr.mxu0 %v68
    %132 = vmatpush1.msra.mxu0 %v67
    %133 = vmatprep.subr.mxu0 %v71
    %134 = vmatpush1.msra.mxu0 %v70
    %135 = vmatprep.subr.mxu0 %v74
    %136 = vmatpush1.msra.mxu0 %v73
    %137 = vmatprep.subr.mxu0 %v77
    %138 = vmatpush1.msra.mxu0 %v76
    %139 = vmatprep.subr.mxu0 %v80
    %140 = vmatpush1.msra.mxu0 %v79
    %141 = vmatprep.subr.mxu0 %v83
    %142 = vmatpush1.msra.mxu0 %v82
    %143 = vmatprep.subr.mxu0 %v86
    %144 = vmatpush1.msra.mxu0 %v85
    %145 = vmatprep.subr.mxu0 %v89
    %146 = vmatpush1.msra.mxu0 %v88
    %147 = vmatprep.subr.mxu0 %v92
    %148 = vmatpush1.msra.mxu0 %v91
    %149 = vmatprep.subr.mxu0 %v95
    %150 = vmatpush1.msra.mxu0 %v94
    %151 = vmatprep.subr.mxu0 %v98
    %152 = vmatpush1.msra.mxu0 %v97
    %153 = vmatprep.subr.mxu0 %v101
    %154 = vmatpush1.msra.mxu0 %v100
    %155 = vmatprep.subr.mxu0 %v104
    %156 = vmatpush1.msra.mxu0 %v103
    %157 = vmatprep.subr.mxu0 %v107
    %158 = vmatpush1.msra.mxu0 %v106
    %159 = vmatprep.subr.mxu0 %v110
    %160 = vmatpush1.msra.mxu0 %v109
    %161 = vmatprep.subr.mxu0 0.0
    %162 = vmatpush1.msra.mxu0 0.0
    %163 = vmatprep.subr.mxu0 0.0
    %164 = vmatpush1.msra.mxu0 0.0
    %165 = vmatprep.subr.mxu0 0.0
    %166 = vmatpush1.msra.mxu0 0.0
    %167 = vmatprep.subr.mxu0 0.0
    %168 = vmatpush1.msra.mxu0 0.0
    %169 = vmatprep.subr.mxu0 0.0
    %170 = vmatpush1.msra.mxu0 0.0
    %171 = vmatprep.subr.mxu0 0.0
    %172 = vmatpush1.msra.mxu0 0.0
    %173 = vmatprep.subr.mxu0 0.0
    %174 = vmatpush1.msra.mxu0 0.0
    %175 = vmatprep.subr.mxu0 0.0
    %176 = vmatpush1.msra.mxu0 0.0
    %177 = vmatprep.subr.mxu0 0.0
    %178 = vmatpush1.msra.mxu0 0.0
    %179 = vmatprep.subr.mxu0 0.0
    %180 = vmatpush1.msra.mxu0 0.0
    %181 = vmatprep.subr.mxu0 0.0
    %182 = vmatpush1.msra.mxu0 0.0
    %183 = vmatprep.subr.mxu0 0.0
    %184 = vmatpush1.msra.mxu0 0.0
    %185 = vmatprep.subr.mxu0 0.0
    %186 = vmatpush1.msra.mxu0 0.0
    %187 = vmatprep.subr.mxu0 0.0
    %188 = vmatpush1.msra.mxu0 0.0
    %189 = vmatprep.subr.mxu0 0.0
    %190 = vmatpush1.msra.mxu0 0.0
    %191 = vmatprep.subr.mxu0 0.0
    %192 = vmatpush1.msra.mxu0 0.0
    %193 = vmatprep.mubr.f32.mxu0 0.0
    %194 = vmatmul.mubr.f32.gmra.mrb[0].mxu0 %v63
    %v195 = vpop.f32.mrb[0].mxu0
    %v196 = vadd.f32 %v117, %v195
    %v197 = vpop.f32.mrb[0].mxu0
    %v198 = vadd.f32 %v121, %v197
    %199 = vdwg.mxu0
    %200 = vmatprep.subr.mxu0 0.0
    %201 = vmatpush1.msra.mxu0 %v66
    %202 = vmatprep.subr.mxu0 0.0
    %203 = vmatpush1.msra.mxu0 %v69
    %204 = vmatprep.subr.mxu0 0.0
    %205 = vmatpush1.msra.mxu0 %v72
    %206 = vmatprep.subr.mxu0 0.0
    %207 = vmatpush1.msra.mxu0 %v75
    %208 = vmatprep.subr.mxu0 0.0
    %209 = vmatpush1.msra.mxu0 %v78
    %210 = vmatprep.subr.mxu0 0.0
    %211 = vmatpush1.msra.mxu0 %v81
    %212 = vmatprep.subr.mxu0 0.0
    %213 = vmatpush1.msra.mxu0 %v84
    %214 = vmatprep.subr.mxu0 0.0
    %215 = vmatpush1.msra.mxu0 %v87
    %216 = vmatprep.subr.mxu0 0.0
    %217 = vmatpush1.msra.mxu0 %v90
    %218 = vmatprep.subr.mxu0 0.0
    %219 = vmatpush1.msra.mxu0 %v93
    %220 = vmatprep.subr.mxu0 0.0
    %221 = vmatpush1.msra.mxu0 %v96
    %222 = vmatprep.subr.mxu0 0.0
    %223 = vmatpush1.msra.mxu0 %v99
    %224 = vmatprep.subr.mxu0 0.0
    %225 = vmatpush1.msra.mxu0 %v102
    %226 = vmatprep.subr.mxu0 0.0
    %227 = vmatpush1.msra.mxu0 %v105
    %228 = vmatprep.subr.mxu0 0.0
    %229 = vmatpush1.msra.mxu0 %v108
    %230 = vmatprep.subr.mxu0 0.0
    %231 = vmatpush1.msra.mxu0 %v111
    %232 = vmatprep.subr.mxu0 0.0
    %233 = vmatpush1.msra.mxu0 0.0
    %234 = vmatprep.subr.mxu0 0.0
    %235 = vmatpush1.msra.mxu0 0.0
    %236 = vmatprep.subr.mxu0 0.0
    %237 = vmatpush1.msra.mxu0 0.0
    %238 = vmatprep.subr.mxu0 0.0
    %239 = vmatpush1.msra.mxu0 0.0
    %240 = vmatprep.subr.mxu0 0.0
    %241 = vmatpush1.msra.mxu0 0.0
    %242 = vmatprep.subr.mxu0 0.0
    %243 = vmatpush1.msra.mxu0 0.0
    %244 = vmatprep.subr.mxu0 0.0
    %245 = vmatpush1.msra.mxu0 0.0
    %246 = vmatprep.subr.mxu0 0.0
    %247 = vmatpush1.msra.mxu0 0.0
    %248 = vmatprep.subr.mxu0 0.0
    %249 = vmatpush1.msra.mxu0 0.0
    %250 = vmatprep.subr.mxu0 0.0
    %251 = vmatpush1.msra.mxu0 0.0
    %252 = vmatprep.subr.mxu0 0.0
    %253 = vmatpush1.msra.mxu0 0.0
    %254 = vmatprep.subr.mxu0 0.0
    %255 = vmatpush1.msra.mxu0 0.0
    %256 = vmatprep.subr.mxu0 0.0
    %257 = vmatpush1.msra.mxu0 0.0
    %258 = vmatprep.subr.mxu0 0.0
    %259 = vmatpush1.msra.mxu0 0.0
    %260 = vmatprep.subr.mxu0 0.0
    %261 = vmatpush1.msra.mxu0 0.0
    %262 = vmatprep.subr.mxu0 0.0
    %263 = vmatpush1.msra.mxu0 0.0
    %264 = vmatprep.mubr.f32.mxu0 0.0
    %265 = vmatmul.mubr.f32.gmra.mrb[0].mxu0 %v63
    %v266 = vpop.f32.mrb[0].mxu0
    %v267 = vadd.f32 %v125, %v266
    %v268 = vpop.f32.mrb[0].mxu0
    %269 = vdwg.mxu0
    %vm270 = vcmask 261120
    %v272 = vsel %vm270, %v196, 0
    %v275 = vsel %vm270, %v198, 0
    %277 = vmatprep.subr.mxu0 0.0
    %278 = vmatpush1.xpose.msra.mxu0 %v275
    %279 = vmatprep.subr.mxu0 0.0
    %280 = vmatpush1.xpose.msra.mxu0 0.0
    %281 = vmatprep.subr.mxu0 0.0
    %282 = vmatpush1.xpose.msra.mxu0 0.0
    %283 = vmatprep.subr.mxu0 0.0
    %284 = vmatpush1.xpose.msra.mxu0 0.0
    %285 = vmatprep.subr.mxu0 0.0
    %286 = vmatpush1.xpose.msra.mxu0 0.0
    %287 = vmatprep.subr.mxu0 0.0
    %288 = vmatpush1.xpose.msra.mxu0 0.0
    %289 = vmatprep.subr.mxu0 0.0
    %290 = vmatpush1.xpose.msra.mxu0 0.0
    %291 = vmatprep.subr.mxu0 0.0
    %292 = vmatpush1.xpose.msra.mxu0 0.0
    %293 = vmatprep.subr.mxu0 0.0
    %294 = vmatpush1.xpose.msra.mxu0 0.0
    %295 = vmatprep.subr.mxu0 0.0
    %296 = vmatpush1.xpose.msra.mxu0 0.0
    %297 = vmatprep.subr.mxu0 0.0
    %298 = vmatpush1.xpose.msra.mxu0 0.0
    %299 = vmatprep.subr.mxu0 0.0
    %300 = vmatpush1.xpose.msra.mxu0 0.0
    %301 = vmatprep.subr.mxu0 0.0
    %302 = vmatpush1.xpose.msra.mxu0 0.0
    %303 = vmatprep.subr.mxu0 0.0
    %304 = vmatpush1.xpose.msra.mxu0 0.0
    %305 = vmatprep.subr.mxu0 0.0
    %306 = vmatpush1.xpose.msra.mxu0 0.0
    %307 = vmatprep.subr.mxu0 0.0
    %308 = vmatpush1.xpose.msra.mxu0 0.0
    %309 = vmatprep.subr.mxu0 0.0
    %310 = vmatpush1.xpose.msra.mxu0 0.0
    %311 = vmatprep.subr.mxu0 0.0
    %312 = vmatpush1.xpose.msra.mxu0 0.0
    %313 = vmatprep.subr.mxu0 0.0
    %314 = vmatpush1.xpose.msra.mxu0 0.0
    %315 = vmatprep.subr.mxu0 0.0
    %316 = vmatpush1.xpose.msra.mxu0 0.0
    %317 = vmatprep.subr.mxu0 0.0
    %318 = vmatpush1.xpose.msra.mxu0 0.0
    %319 = vmatprep.subr.mxu0 0.0
    %320 = vmatpush1.xpose.msra.mxu0 0.0
    %321 = vmatprep.subr.mxu0 0.0
    %322 = vmatpush1.xpose.msra.mxu0 0.0
    %323 = vmatprep.subr.mxu0 0.0
    %324 = vmatpush1.xpose.msra.mxu0 0.0
    %325 = vmatprep.subr.mxu0 0.0
    %326 = vmatpush1.xpose.msra.mxu0 0.0
    %327 = vmatprep.subr.mxu0 0.0
    %328 = vmatpush1.xpose.msra.mxu0 0.0
    %329 = vmatprep.subr.mxu0 0.0
    %330 = vmatpush1.xpose.msra.mxu0 0.0
    %331 = vmatprep.subr.mxu0 0.0
    %332 = vmatpush1.xpose.msra.mxu0 0.0
    %333 = vmatprep.subr.mxu0 0.0
    %334 = vmatpush1.xpose.msra.mxu0 0.0
    %335 = vmatprep.subr.mxu0 0.0
    %336 = vmatpush1.xpose.msra.mxu0 0.0
    %337 = vmatprep.subr.mxu0 0.0
    %338 = vmatpush1.xpose.msra.mxu0 0.0
    %339 = vmatprep.subr.mxu0 0.0
    %340 = vmatpush1.xpose.msra.mxu0 0.0
    %341 = vmatprep.mubr.f32.mxu0 0.0
    %342 = vmatmul.mubr.f32.gmra.mrb[0].mxu0 %v272
    %v343 = vpop.f32.mrb[0].mxu0
    %v344 = vadd.f32 0.0, %v343
    %v345 = vpop.f32.mrb[0].mxu0
    %346 = vdwg.mxu0
    %vm347 = vcmask 64512
    %v348 = vsel %vm347, %v344, -inf
    %349 = vmax.xlane.f32.xlu0 %v348
    %v350 = vpop.xlane.xlu0 %349
    %v351 = vsub.f32 %v344, %v350
    %v352 = vmul.f32 %v351, 1.442695
    %v353 = vpow.pop %v352
    %v354 = vsel %vm347, %v353, 0.0
    %355 = vadd.xlane.f32.xlu0 %v354
    %v356 = vpop.xlane.xlu0 %355
    %v357 = vrcp.pop %v356
    %v358 = vmul.f32 %v353, %v357
    %v360 = vsel %vm347, %v358, 0
    %362 = vmatprep.subr.mxu0 0.0
    %363 = vmatpush1.msra.mxu0 %v267
    %364 = vmatprep.subr.mxu0 0.0
    %365 = vmatpush1.msra.mxu0 0.0
    %366 = vmatprep.subr.mxu0 0.0
    %367 = vmatpush1.msra.mxu0 0.0
    %368 = vmatprep.subr.mxu0 0.0
    %369 = vmatpush1.msra.mxu0 0.0
    %370 = vmatprep.subr.mxu0 0.0
    %371 = vmatpush1.msra.mxu0 0.0
    %372 = vmatprep.subr.mxu0 0.0
    %373 = vmatpush1.msra.mxu0 0.0
    %374 = vmatprep.subr.mxu0 0.0
    %375 = vmatpush1.msra.mxu0 0.0
    %376 = vmatprep.subr.mxu0 0.0
    %377 = vmatpush1.msra.mxu0 0.0
    %378 = vmatprep.subr.mxu0 0.0
    %379 = vmatpush1.msra.mxu0 0.0
    %380 = vmatprep.subr.mxu0 0.0
    %381 = vmatpush1.msra.mxu0 0.0
    %382 = vmatprep.subr.mxu0 0.0
    %383 = vmatpush1.msra.mxu0 0.0
    %384 = vmatprep.subr.mxu0 0.0
    %385 = vmatpush1.msra.mxu0 0.0
    %386 = vmatprep.subr.mxu0 0.0
    %387 = vmatpush1.msra.mxu0 0.0
    %388 = vmatprep.subr.mxu0 0.0
    %389 = vmatpush1.msra.mxu0 0.0
    %390 = vmatprep.subr.mxu0 0.0
    %391 = vmatpush1.msra.mxu0 0.0
    %392 = vmatprep.subr.mxu0 0.0
    %393 = vmatpush1.msra.mxu0 0.0
    %394 = vmatprep.subr.mxu0 0.0
    %395 = vmatpush1.msra.mxu0 0.0
    %396 = vmatprep.subr.mxu0 0.0
    %397 = vmatpush1.msra.mxu0 0.0
    %398 = vmatprep.subr.mxu0 0.0
    %399 = vmatpush1.msra.mxu0 0.0
    %400 = vmatprep.subr.mxu0 0.0
    %401 = vmatpush1.msra.mxu0 0.0
    %402 = vmatprep.subr.mxu0 0.0
    %403 = vmatpush1.msra.mxu0 0.0
    %404 = vmatprep.subr.mxu0 0.0
    %405 = vmatpush1.msra.mxu0 0.0
    %406 = vmatprep.subr.mxu0 0.0
    %407 = vmatpush1.msra.mxu0 0.0
    %408 = vmatprep.subr.mxu0 0.0
    %409 = vmatpush1.msra.mxu0 0.0
    %410 = vmatprep.subr.mxu0 0.0
    %411 = vmatpush1.msra.mxu0 0.0
    %412 = vmatprep.subr.mxu0 0.0
    %413 = vmatpush1.msra.mxu0 0.0
    %414 = vmatprep.subr.mxu0 0.0
    %415 = vmatpush1.msra.mxu0 0.0
    %416 = vmatprep.subr.mxu0 0.0
    %417 = vmatpush1.msra.mxu0 0.0
    %418 = vmatprep.subr.mxu0 0.0
    %419 = vmatpush1.msra.mxu0 0.0
    %420 = vmatprep.subr.mxu0 0.0
    %421 = vmatpush1.msra.mxu0 0.0
    %422 = vmatprep.subr.mxu0 0.0
    %423 = vmatpush1.msra.mxu0 0.0
    %424 = vmatprep.subr.mxu0 0.0
    %425 = vmatpush1.msra.mxu0 0.0
    %426 = vmatprep.mubr.f32.mxu0 0.0
    %427 = vmatmul.mubr.f32.gmra.mrb[0].mxu0 %v360
    %v428 = vpop.f32.mrb[0].mxu0
    %v429 = vadd.f32 0.0, %v428
    %v430 = vpop.f32.mrb[0].mxu0
    %431 = vdwg.mxu0
    %432 = vst.msk [vmem:[#allocation2] sm:$0xff] %vm270, %v429
    %433 = vrot.lane.b32.xlu0 %v196, 96
    %v434 = vpop.permute.xlu0 %433
    %435 = vrot.lane.b32.xlu0 %v198, 96
    %v436 = vpop.permute.xlu0 %435
    %v437 = vsel %vm270, %v434, 0
    %v439 = vsel %vm270, %v436, 0
    %441 = vmatprep.subr.mxu0 0.0
    %442 = vmatpush1.xpose.msra.mxu0 %v439
    %443 = vmatprep.subr.mxu0 0.0
    %444 = vmatpush1.xpose.msra.mxu0 0.0
    %445 = vmatprep.subr.mxu0 0.0
    %446 = vmatpush1.xpose.msra.mxu0 0.0
    %447 = vmatprep.subr.mxu0 0.0
    %448 = vmatpush1.xpose.msra.mxu0 0.0
    %449 = vmatprep.subr.mxu0 0.0
    %450 = vmatpush1.xpose.msra.mxu0 0.0
    %451 = vmatprep.subr.mxu0 0.0
    %452 = vmatpush1.xpose.msra.mxu0 0.0
    %453 = vmatprep.subr.mxu0 0.0
    %454 = vmatpush1.xpose.msra.mxu0 0.0
    %455 = vmatprep.subr.mxu0 0.0
    %456 = vmatpush1.xpose.msra.mxu0 0.0
    %457 = vmatprep.subr.mxu0 0.0
    %458 = vmatpush1.xpose.msra.mxu0 0.0
    %459 = vmatprep.subr.mxu0 0.0
    %460 = vmatpush1.xpose.msra.mxu0 0.0
    %461 = vmatprep.subr.mxu0 0.0
    %462 = vmatpush1.xpose.msra.mxu0 0.0
    %463 = vmatprep.subr.mxu0 0.0
    %464 = vmatpush1.xpose.msra.mxu0 0.0
    %465 = vmatprep.subr.mxu0 0.0
    %466 = vmatpush1.xpose.msra.mxu0 0.0
    %467 = vmatprep.subr.mxu0 0.0
    %468 = vmatpush1.xpose.msra.mxu0 0.0
    %469 = vmatprep.subr.mxu0 0.0
    %470 = vmatpush1.xpose.msra.mxu0 0.0
    %471 = vmatprep.subr.mxu0 0.0
    %472 = vmatpush1.xpose.msra.mxu0 0.0
    %473 = vmatprep.subr.mxu0 0.0
    %474 = vmatpush1.xpose.msra.mxu0 0.0
    %475 = vmatprep.subr.mxu0 0.0
    %476 = vmatpush1.xpose.msra.mxu0 0.0
    %477 = vmatprep.subr.mxu0 0.0
    %478 = vmatpush1.xpose.msra.mxu0 0.0
    %479 = vmatprep.subr.mxu0 0.0
    %480 = vmatpush1.xpose.msra.mxu0 0.0
    %481 = vmatprep.subr.mxu0 0.0
    %482 = vmatpush1.xpose.msra.mxu0 0.0
    %483 = vmatprep.subr.mxu0 0.0
    %484 = vmatpush1.xpose.msra.mxu0 0.0
    %485 = vmatprep.subr.mxu0 0.0
    %486 = vmatpush1.xpose.msra.mxu0 0.0
    %487 = vmatprep.subr.mxu0 0.0
    %488 = vmatpush1.xpose.msra.mxu0 0.0
    %489 = vmatprep.subr.mxu0 0.0
    %490 = vmatpush1.xpose.msra.mxu0 0.0
    %491 = vmatprep.subr.mxu0 0.0
    %492 = vmatpush1.xpose.msra.mxu0 0.0
    %493 = vmatprep.subr.mxu0 0.0
    %494 = vmatpush1.xpose.msra.mxu0 0.0
    %495 = vmatprep.subr.mxu0 0.0
    %496 = vmatpush1.xpose.msra.mxu0 0.0
    %497 = vmatprep.subr.mxu0 0.0
    %498 = vmatpush1.xpose.msra.mxu0 0.0
    %499 = vmatprep.subr.mxu0 0.0
    %500 = vmatpush1.xpose.msra.mxu0 0.0
    %501 = vmatprep.subr.mxu0 0.0
    %502 = vmatpush1.xpose.msra.mxu0 0.0
    %503 = vmatprep.subr.mxu0 0.0
    %504 = vmatpush1.xpose.msra.mxu0 0.0
    %505 = vmatprep.mubr.f32.mxu0 0.0
    %506 = vmatmul.mubr.f32.gmra.mrb[0].mxu0 %v437
    %v507 = vpop.f32.mrb[0].mxu0
    %v508 = vadd.f32 0.0, %v507
    %v509 = vpop.f32.mrb[0].mxu0
    %510 = vdwg.mxu0
    %v511 = vsel %vm347, %v508, -inf
    %512 = vmax.xlane.f32.xlu0 %v511
    %v513 = vpop.xlane.xlu0 %512
    %v514 = vsub.f32 %v508, %v513
    %v515 = vmul.f32 %v514, 1.442695
    %v516 = vpow.pop %v515
    %v517 = vsel %vm347, %v516, 0.0
    %518 = vadd.xlane.f32.xlu0 %v517
    %v519 = vpop.xlane.xlu0 %518
    %v520 = vrcp.pop %v519
    %v521 = vmul.f32 %v516, %v520
    %523 = vrot.lane.b32.xlu0 %v267, 96
    %v524 = vpop.permute.xlu0 %523
    %v527 = vsel %vm347, %v521, 0
    %529 = vmatprep.subr.mxu0 0.0
    %530 = vmatpush1.msra.mxu0 %v524
    %531 = vmatprep.subr.mxu0 0.0
    %532 = vmatpush1.msra.mxu0 0.0
    %533 = vmatprep.subr.mxu0 0.0
    %534 = vmatpush1.msra.mxu0 0.0
    %535 = vmatprep.subr.mxu0 0.0
    %536 = vmatpush1.msra.mxu0 0.0
    %537 = vmatprep.subr.mxu0 0.0
    %538 = vmatpush1.msra.mxu0 0.0
    %539 = vmatprep.subr.mxu0 0.0
    %540 = vmatpush1.msra.mxu0 0.0
    %541 = vmatprep.subr.mxu0 0.0
    %542 = vmatpush1.msra.mxu0 0.0
    %543 = vmatprep.subr.mxu0 0.0
    %544 = vmatpush1.msra.mxu0 0.0
    %545 = vmatprep.subr.mxu0 0.0
    %546 = vmatpush1.msra.mxu0 0.0
    %547 = vmatprep.subr.mxu0 0.0
    %548 = vmatpush1.msra.mxu0 0.0
    %549 = vmatprep.subr.mxu0 0.0
    %550 = vmatpush1.msra.mxu0 0.0
    %551 = vmatprep.subr.mxu0 0.0
    %552 = vmatpush1.msra.mxu0 0.0
    %553 = vmatprep.subr.mxu0 0.0
    %554 = vmatpush1.msra.mxu0 0.0
    %555 = vmatprep.subr.mxu0 0.0
    %556 = vmatpush1.msra.mxu0 0.0
    %557 = vmatprep.subr.mxu0 0.0
    %558 = vmatpush1.msra.mxu0 0.0
    %559 = vmatprep.subr.mxu0 0.0
    %560 = vmatpush1.msra.mxu0 0.0
    %561 = vmatprep.subr.mxu0 0.0
    %562 = vmatpush1.msra.mxu0 0.0
    %563 = vmatprep.subr.mxu0 0.0
    %564 = vmatpush1.msra.mxu0 0.0
    %565 = vmatprep.subr.mxu0 0.0
    %566 = vmatpush1.msra.mxu0 0.0
    %567 = vmatprep.subr.mxu0 0.0
    %568 = vmatpush1.msra.mxu0 0.0
    %569 = vmatprep.subr.mxu0 0.0
    %570 = vmatpush1.msra.mxu0 0.0
    %571 = vmatprep.subr.mxu0 0.0
    %572 = vmatpush1.msra.mxu0 0.0
    %573 = vmatprep.subr.mxu0 0.0
    %574 = vmatpush1.msra.mxu0 0.0
    %575 = vmatprep.subr.mxu0 0.0
    %576 = vmatpush1.msra.mxu0 0.0
    %577 = vmatprep.subr.mxu0 0.0
    %578 = vmatpush1.msra.mxu0 0.0
    %579 = vmatprep.subr.mxu0 0.0
    %580 = vmatpush1.msra.mxu0 0.0
    %581 = vmatprep.subr.mxu0 0.0
    %582 = vmatpush1.msra.mxu0 0.0
    %583 = vmatprep.subr.mxu0 0.0
    %584 = vmatpush1.msra.mxu0 0.0
    %585 = vmatprep.subr.mxu0 0.0
    %586 = vmatpush1.msra.mxu0 0.0
    %587 = vmatprep.subr.mxu0 0.0
    %588 = vmatpush1.msra.mxu0 0.0
    %589 = vmatprep.subr.mxu0 0.0
    %590 = vmatpush1.msra.mxu0 0.0
    %591 = vmatprep.subr.mxu0 0.0
    %592 = vmatpush1.msra.mxu0 0.0
    %593 = vmatprep.mubr.f32.mxu0 0.0
    %594 = vmatmul.mubr.f32.gmra.mrb[0].mxu0 %v527
    %v595 = vpop.f32.mrb[0].mxu0
    %v596 = vadd.f32 0.0, %v595
    %v597 = vpop.f32.mrb[0].mxu0
    %598 = vdwg.mxu0
    %600 = vrot.lane.b32.xlu0 %v596, 32
    %v601 = vpop.permute.xlu0 %600
    %vm603 = vcmask 523520
    %604 = vst.msk [vmem:[#allocation2] sm:$0xff] %vm603, %v601
    %605 = vrot.lane.b32.xlu0 %v196, 64
    %v606 = vpop.permute.xlu0 %605
    %607 = vrot.lane.b32.xlu0 %v198, 64
    %v608 = vpop.permute.xlu0 %607
    %v609 = vsel %vm270, %v606, 0
    %v611 = vsel %vm270, %v608, 0
    %613 = vmatprep.subr.mxu0 0.0
    %614 = vmatpush1.xpose.msra.mxu0 %v611
    %615 = vmatprep.subr.mxu0 0.0
    %616 = vmatpush1.xpose.msra.mxu0 0.0
    %617 = vmatprep.subr.mxu0 0.0
    %618 = vmatpush1.xpose.msra.mxu0 0.0
    %619 = vmatprep.subr.mxu0 0.0
    %620 = vmatpush1.xpose.msra.mxu0 0.0
    %621 = vmatprep.subr.mxu0 0.0
    %622 = vmatpush1.xpose.msra.mxu0 0.0
    %623 = vmatprep.subr.mxu0 0.0
    %624 = vmatpush1.xpose.msra.mxu0 0.0
    %625 = vmatprep.subr.mxu0 0.0
    %626 = vmatpush1.xpose.msra.mxu0 0.0
    %627 = vmatprep.subr.mxu0 0.0
    %628 = vmatpush1.xpose.msra.mxu0 0.0
    %629 = vmatprep.subr.mxu0 0.0
    %630 = vmatpush1.xpose.msra.mxu0 0.0
    %631 = vmatprep.subr.mxu0 0.0
    %632 = vmatpush1.xpose.msra.mxu0 0.0
    %633 = vmatprep.subr.mxu0 0.0
    %634 = vmatpush1.xpose.msra.mxu0 0.0
    %635 = vmatprep.subr.mxu0 0.0
    %636 = vmatpush1.xpose.msra.mxu0 0.0
    %637 = vmatprep.subr.mxu0 0.0
    %638 = vmatpush1.xpose.msra.mxu0 0.0
    %639 = vmatprep.subr.mxu0 0.0
    %640 = vmatpush1.xpose.msra.mxu0 0.0
    %641 = vmatprep.subr.mxu0 0.0
    %642 = vmatpush1.xpose.msra.mxu0 0.0
    %643 = vmatprep.subr.mxu0 0.0
    %644 = vmatpush1.xpose.msra.mxu0 0.0
    %645 = vmatprep.subr.mxu0 0.0
    %646 = vmatpush1.xpose.msra.mxu0 0.0
    %647 = vmatprep.subr.mxu0 0.0
    %648 = vmatpush1.xpose.msra.mxu0 0.0
    %649 = vmatprep.subr.mxu0 0.0
    %650 = vmatpush1.xpose.msra.mxu0 0.0
    %651 = vmatprep.subr.mxu0 0.0
    %652 = vmatpush1.xpose.msra.mxu0 0.0
    %653 = vmatprep.subr.mxu0 0.0
    %654 = vmatpush1.xpose.msra.mxu0 0.0
    %655 = vmatprep.subr.mxu0 0.0
    %656 = vmatpush1.xpose.msra.mxu0 0.0
    %657 = vmatprep.subr.mxu0 0.0
    %658 = vmatpush1.xpose.msra.mxu0 0.0
    %659 = vmatprep.subr.mxu0 0.0
    %660 = vmatpush1.xpose.msra.mxu0 0.0
    %661 = vmatprep.subr.mxu0 0.0
    %662 = vmatpush1.xpose.msra.mxu0 0.0
    %663 = vmatprep.subr.mxu0 0.0
    %664 = vmatpush1.xpose.msra.mxu0 0.0
    %665 = vmatprep.subr.mxu0 0.0
    %666 = vmatpush1.xpose.msra.mxu0 0.0
    %667 = vmatprep.subr.mxu0 0.0
    %668 = vmatpush1.xpose.msra.mxu0 0.0
    %669 = vmatprep.subr.mxu0 0.0
    %670 = vmatpush1.xpose.msra.mxu0 0.0
    %671 = vmatprep.subr.mxu0 0.0
    %672 = vmatpush1.xpose.msra.mxu0 0.0
    %673 = vmatprep.subr.mxu0 0.0
    %674 = vmatpush1.xpose.msra.mxu0 0.0
    %675 = vmatprep.subr.mxu0 0.0
    %676 = vmatpush1.xpose.msra.mxu0 0.0
    %677 = vmatprep.mubr.f32.mxu0 0.0
    %678 = vmatmul.mubr.f32.gmra.mrb[0].mxu0 %v609
    %v679 = vpop.f32.mrb[0].mxu0
    %v680 = vadd.f32 0.0, %v679
    %v681 = vpop.f32.mrb[0].mxu0
    %682 = vdwg.mxu0
    %v683 = vsel %vm347, %v680, -inf
    %684 = vmax.xlane.f32.xlu0 %v683
    %v685 = vpop.xlane.xlu0 %684
    %v686 = vsub.f32 %v680, %v685
    %v687 = vmul.f32 %v686, 1.442695
    %v688 = vpow.pop %v687
    %v689 = vsel %vm347, %v688, 0.0
    %690 = vadd.xlane.f32.xlu0 %v689
    %v691 = vpop.xlane.xlu0 %690
    %v692 = vrcp.pop %v691
    %v693 = vmul.f32 %v688, %v692
    %694 = vrot.lane.b32.xlu0 %v267, 64
    %v695 = vpop.permute.xlu0 %694
    %v698 = vsel %vm347, %v693, 0
    %700 = vmatprep.subr.mxu0 0.0
    %701 = vmatpush1.msra.mxu0 %v695
    %702 = vmatprep.subr.mxu0 0.0
    %703 = vmatpush1.msra.mxu0 0.0
    %704 = vmatprep.subr.mxu0 0.0
    %705 = vmatpush1.msra.mxu0 0.0
    %706 = vmatprep.subr.mxu0 0.0
    %707 = vmatpush1.msra.mxu0 0.0
    %708 = vmatprep.subr.mxu0 0.0
    %709 = vmatpush1.msra.mxu0 0.0
    %710 = vmatprep.subr.mxu0 0.0
    %711 = vmatpush1.msra.mxu0 0.0
    %712 = vmatprep.subr.mxu0 0.0
    %713 = vmatpush1.msra.mxu0 0.0
    %714 = vmatprep.subr.mxu0 0.0
    %715 = vmatpush1.msra.mxu0 0.0
    %716 = vmatprep.subr.mxu0 0.0
    %717 = vmatpush1.msra.mxu0 0.0
    %718 = vmatprep.subr.mxu0 0.0
    %719 = vmatpush1.msra.mxu0 0.0
    %720 = vmatprep.subr.mxu0 0.0
    %721 = vmatpush1.msra.mxu0 0.0
    %722 = vmatprep.subr.mxu0 0.0
    %723 = vmatpush1.msra.mxu0 0.0
    %724 = vmatprep.subr.mxu0 0.0
    %725 = vmatpush1.msra.mxu0 0.0
    %726 = vmatprep.subr.mxu0 0.0
    %727 = vmatpush1.msra.mxu0 0.0
    %728 = vmatprep.subr.mxu0 0.0
    %729 = vmatpush1.msra.mxu0 0.0
    %730 = vmatprep.subr.mxu0 0.0
    %731 = vmatpush1.msra.mxu0 0.0
    %732 = vmatprep.subr.mxu0 0.0
    %733 = vmatpush1.msra.mxu0 0.0
    %734 = vmatprep.subr.mxu0 0.0
    %735 = vmatpush1.msra.mxu0 0.0
    %736 = vmatprep.subr.mxu0 0.0
    %737 = vmatpush1.msra.mxu0 0.0
    %738 = vmatprep.subr.mxu0 0.0
    %739 = vmatpush1.msra.mxu0 0.0
    %740 = vmatprep.subr.mxu0 0.0
    %741 = vmatpush1.msra.mxu0 0.0
    %742 = vmatprep.subr.mxu0 0.0
    %743 = vmatpush1.msra.mxu0 0.0
    %744 = vmatprep.subr.mxu0 0.0
    %745 = vmatpush1.msra.mxu0 0.0
    %746 = vmatprep.subr.mxu0 0.0
    %747 = vmatpush1.msra.mxu0 0.0
    %748 = vmatprep.subr.mxu0 0.0
    %749 = vmatpush1.msra.mxu0 0.0
    %750 = vmatprep.subr.mxu0 0.0
    %751 = vmatpush1.msra.mxu0 0.0
    %752 = vmatprep.subr.mxu0 0.0
    %753 = vmatpush1.msra.mxu0 0.0
    %754 = vmatprep.subr.mxu0 0.0
    %755 = vmatpush1.msra.mxu0 0.0
    %756 = vmatprep.subr.mxu0 0.0
    %757 = vmatpush1.msra.mxu0 0.0
    %758 = vmatprep.subr.mxu0 0.0
    %759 = vmatpush1.msra.mxu0 0.0
    %760 = vmatprep.subr.mxu0 0.0
    %761 = vmatpush1.msra.mxu0 0.0
    %762 = vmatprep.subr.mxu0 0.0
    %763 = vmatpush1.msra.mxu0 0.0
    %764 = vmatprep.mubr.f32.mxu0 0.0
    %765 = vmatmul.mubr.f32.gmra.mrb[0].mxu0 %v698
    %v766 = vpop.f32.mrb[0].mxu0
    %v767 = vadd.f32 0.0, %v766
    %v768 = vpop.f32.mrb[0].mxu0
    %769 = vdwg.mxu0
    %771 = vrot.lane.b32.xlu0 %v767, 64
    %v772 = vpop.permute.xlu0 %771
    %vm774 = vcmask 785920
    %775 = vst.msk [vmem:[#allocation2] sm:$0xff] %vm774, %v772
    %776 = vrot.lane.b32.xlu0 %v196, 32
    %v777 = vpop.permute.xlu0 %776
    %778 = vrot.lane.b32.xlu0 %v198, 32
    %v779 = vpop.permute.xlu0 %778
    %v780 = vsel %vm270, %v777, 0
    %v782 = vsel %vm270, %v779, 0
    %784 = vmatprep.subr.mxu0 0.0
    %785 = vmatpush1.xpose.msra.mxu0 %v782
    %786 = vmatprep.subr.mxu0 0.0
    %787 = vmatpush1.xpose.msra.mxu0 0.0
    %788 = vmatprep.subr.mxu0 0.0
    %789 = vmatpush1.xpose.msra.mxu0 0.0
    %790 = vmatprep.subr.mxu0 0.0
    %791 = vmatpush1.xpose.msra.mxu0 0.0
    %792 = vmatprep.subr.mxu0 0.0
    %793 = vmatpush1.xpose.msra.mxu0 0.0
    %794 = vmatprep.subr.mxu0 0.0
    %795 = vmatpush1.xpose.msra.mxu0 0.0
    %796 = vmatprep.subr.mxu0 0.0
    %797 = vmatpush1.xpose.msra.mxu0 0.0
    %798 = vmatprep.subr.mxu0 0.0
    %799 = vmatpush1.xpose.msra.mxu0 0.0
    %800 = vmatprep.subr.mxu0 0.0
    %801 = vmatpush1.xpose.msra.mxu0 0.0
    %802 = vmatprep.subr.mxu0 0.0
    %803 = vmatpush1.xpose.msra.mxu0 0.0
    %804 = vmatprep.subr.mxu0 0.0
    %805 = vmatpush1.xpose.msra.mxu0 0.0
    %806 = vmatprep.subr.mxu0 0.0
    %807 = vmatpush1.xpose.msra.mxu0 0.0
    %808 = vmatprep.subr.mxu0 0.0
    %809 = vmatpush1.xpose.msra.mxu0 0.0
    %810 = vmatprep.subr.mxu0 0.0
    %811 = vmatpush1.xpose.msra.mxu0 0.0
    %812 = vmatprep.subr.mxu0 0.0
    %813 = vmatpush1.xpose.msra.mxu0 0.0
    %814 = vmatprep.subr.mxu0 0.0
    %815 = vmatpush1.xpose.msra.mxu0 0.0
    %816 = vmatprep.subr.mxu0 0.0
    %817 = vmatpush1.xpose.msra.mxu0 0.0
    %818 = vmatprep.subr.mxu0 0.0
    %819 = vmatpush1.xpose.msra.mxu0 0.0
    %820 = vmatprep.subr.mxu0 0.0
    %821 = vmatpush1.xpose.msra.mxu0 0.0
    %822 = vmatprep.subr.mxu0 0.0
    %823 = vmatpush1.xpose.msra.mxu0 0.0
    %824 = vmatprep.subr.mxu0 0.0
    %825 = vmatpush1.xpose.msra.mxu0 0.0
    %826 = vmatprep.subr.mxu0 0.0
    %827 = vmatpush1.xpose.msra.mxu0 0.0
    %828 = vmatprep.subr.mxu0 0.0
    %829 = vmatpush1.xpose.msra.mxu0 0.0
    %830 = vmatprep.subr.mxu0 0.0
    %831 = vmatpush1.xpose.msra.mxu0 0.0
    %832 = vmatprep.subr.mxu0 0.0
    %833 = vmatpush1.xpose.msra.mxu0 0.0
    %834 = vmatprep.subr.mxu0 0.0
    %835 = vmatpush1.xpose.msra.mxu0 0.0
    %836 = vmatprep.subr.mxu0 0.0
    %837 = vmatpush1.xpose.msra.mxu0 0.0
    %838 = vmatprep.subr.mxu0 0.0
    %839 = vmatpush1.xpose.msra.mxu0 0.0
    %840 = vmatprep.subr.mxu0 0.0
    %841 = vmatpush1.xpose.msra.mxu0 0.0
    %842 = vmatprep.subr.mxu0 0.0
    %843 = vmatpush1.xpose.msra.mxu0 0.0
    %844 = vmatprep.subr.mxu0 0.0
    %845 = vmatpush1.xpose.msra.mxu0 0.0
    %846 = vmatprep.subr.mxu0 0.0
    %847 = vmatpush1.xpose.msra.mxu0 0.0
    %848 = vmatprep.mubr.f32.mxu0 0.0
    %849 = vmatmul.mubr.f32.gmra.mrb[0].mxu0 %v780
    %v850 = vpop.f32.mrb[0].mxu0
    %v851 = vadd.f32 0.0, %v850
    %v852 = vpop.f32.mrb[0].mxu0
    %853 = vdwg.mxu0
    %v854 = vsel %vm347, %v851, -inf
    %855 = vmax.xlane.f32.xlu0 %v854
    %v856 = vpop.xlane.xlu0 %855
    %v857 = vsub.f32 %v851, %v856
    %v858 = vmul.f32 %v857, 1.442695
    %v859 = vpow.pop %v858
    %v860 = vsel %vm347, %v859, 0.0
    %861 = vadd.xlane.f32.xlu0 %v860
    %v862 = vpop.xlane.xlu0 %861
    %v863 = vrcp.pop %v862
    %v864 = vmul.f32 %v859, %v863
    %865 = vrot.lane.b32.xlu0 %v267, 32
    %v866 = vpop.permute.xlu0 %865
    %v869 = vsel %vm347, %v864, 0
    %871 = vmatprep.subr.mxu0 0.0
    %872 = vmatpush1.msra.mxu0 %v866
    %873 = vmatprep.subr.mxu0 0.0
    %874 = vmatpush1.msra.mxu0 0.0
    %875 = vmatprep.subr.mxu0 0.0
    %876 = vmatpush1.msra.mxu0 0.0
    %877 = vmatprep.subr.mxu0 0.0
    %878 = vmatpush1.msra.mxu0 0.0
    %879 = vmatprep.subr.mxu0 0.0
    %880 = vmatpush1.msra.mxu0 0.0
    %881 = vmatprep.subr.mxu0 0.0
    %882 = vmatpush1.msra.mxu0 0.0
    %883 = vmatprep.subr.mxu0 0.0
    %884 = vmatpush1.msra.mxu0 0.0
    %885 = vmatprep.subr.mxu0 0.0
    %886 = vmatpush1.msra.mxu0 0.0
    %887 = vmatprep.subr.mxu0 0.0
    %888 = vmatpush1.msra.mxu0 0.0
    %889 = vmatprep.subr.mxu0 0.0
    %890 = vmatpush1.msra.mxu0 0.0
    %891 = vmatprep.subr.mxu0 0.0
    %892 = vmatpush1.msra.mxu0 0.0
    %893 = vmatprep.subr.mxu0 0.0
    %894 = vmatpush1.msra.mxu0 0.0
    %895 = vmatprep.subr.mxu0 0.0
    %896 = vmatpush1.msra.mxu0 0.0
    %897 = vmatprep.subr.mxu0 0.0
    %898 = vmatpush1.msra.mxu0 0.0
    %899 = vmatprep.subr.mxu0 0.0
    %900 = vmatpush1.msra.mxu0 0.0
    %901 = vmatprep.subr.mxu0 0.0
    %902 = vmatpush1.msra.mxu0 0.0
    %903 = vmatprep.subr.mxu0 0.0
    %904 = vmatpush1.msra.mxu0 0.0
    %905 = vmatprep.subr.mxu0 0.0
    %906 = vmatpush1.msra.mxu0 0.0
    %907 = vmatprep.subr.mxu0 0.0
    %908 = vmatpush1.msra.mxu0 0.0
    %909 = vmatprep.subr.mxu0 0.0
    %910 = vmatpush1.msra.mxu0 0.0
    %911 = vmatprep.subr.mxu0 0.0
    %912 = vmatpush1.msra.mxu0 0.0
    %913 = vmatprep.subr.mxu0 0.0
    %914 = vmatpush1.msra.mxu0 0.0
    %915 = vmatprep.subr.mxu0 0.0
    %916 = vmatpush1.msra.mxu0 0.0
    %917 = vmatprep.subr.mxu0 0.0
    %918 = vmatpush1.msra.mxu0 0.0
    %919 = vmatprep.subr.mxu0 0.0
    %920 = vmatpush1.msra.mxu0 0.0
    %921 = vmatprep.subr.mxu0 0.0
    %922 = vmatpush1.msra.mxu0 0.0
    %923 = vmatprep.subr.mxu0 0.0
    %924 = vmatpush1.msra.mxu0 0.0
    %925 = vmatprep.subr.mxu0 0.0
    %926 = vmatpush1.msra.mxu0 0.0
    %927 = vmatprep.subr.mxu0 0.0
    %928 = vmatpush1.msra.mxu0 0.0
    %929 = vmatprep.subr.mxu0 0.0
    %930 = vmatpush1.msra.mxu0 0.0
    %931 = vmatprep.subr.mxu0 0.0
    %932 = vmatpush1.msra.mxu0 0.0
    %933 = vmatprep.subr.mxu0 0.0
    %934 = vmatpush1.msra.mxu0 0.0
    %935 = vmatprep.mubr.f32.mxu0 0.0
    %936 = vmatmul.mubr.f32.gmra.mrb[0].mxu0 %v869
    %v937 = vpop.f32.mrb[0].mxu0
    %v938 = vadd.f32 0.0, %v937
    %v939 = vpop.f32.mrb[0].mxu0
    %940 = vdwg.mxu0
    %942 = vrot.lane.b32.xlu0 %v938, 96
    %v943 = vpop.permute.xlu0 %942
    %vm945 = vcmask 1048320
    %946 = vst.msk [vmem:[#allocation2] sm:$0xff] %vm945, %v943
    %v947 = vld [vmem:[#allocation2] sm:$0xff]
    %v948 = vld [vmem:[#allocation8] sm:$0xff]
    %v949 = vld [vmem:[#allocation8 + $0x8] sm:$0xff]
    %v950 = vld [vmem:[#allocation8 + $0x10] sm:$0xff]
    %v951 = vld [vmem:[#allocation8 + $0x18] sm:$0xff]
    %v952 = vld [vmem:[#allocation8 + $0x20] sm:$0xff]
    %v953 = vld [vmem:[#allocation8 + $0x28] sm:$0xff]
    %v954 = vld [vmem:[#allocation8 + $0x30] sm:$0xff]
    %v955 = vld [vmem:[#allocation8 + $0x38] sm:$0xff]
    %v956 = vld [vmem:[#allocation8 + $0x40] sm:$0xff]
    %v957 = vld [vmem:[#allocation8 + $0x48] sm:$0xff]
    %v958 = vld [vmem:[#allocation8 + $0x50] sm:$0xff]
    %v959 = vld [vmem:[#allocation8 + $0x58] sm:$0xff]
    %v960 = vld [vmem:[#allocation8 + $0x60] sm:$0xff]
    %v961 = vld [vmem:[#allocation8 + $0x68] sm:$0xff]
    %v962 = vld [vmem:[#allocation8 + $0x70] sm:$0xff]
    %v963 = vld [vmem:[#allocation8 + $0x78] sm:$0xff]
    %v964 = vld [vmem:[%s4] sm:$0x1]
    %v966 = vlaneseq
    %v967 = vshrl.u32 %v966, 7
    %v968 = vsub.s32 0, %v967
    %v969 = vrot.slane %v964, %v968
    %971 = vmatprep.subr.mxu0 0.0
    %972 = vmatpush1.msra.mxu0 %v948
    %973 = vmatprep.subr.mxu0 0.0
    %974 = vmatpush1.msra.mxu0 %v949
    %975 = vmatprep.subr.mxu0 0.0
    %976 = vmatpush1.msra.mxu0 %v950
    %977 = vmatprep.subr.mxu0 0.0
    %978 = vmatpush1.msra.mxu0 %v951
    %979 = vmatprep.subr.mxu0 0.0
    %980 = vmatpush1.msra.mxu0 %v952
    %981 = vmatprep.subr.mxu0 0.0
    %982 = vmatpush1.msra.mxu0 %v953
    %983 = vmatprep.subr.mxu0 0.0
    %984 = vmatpush1.msra.mxu0 %v954
    %985 = vmatprep.subr.mxu0 0.0
    %986 = vmatpush1.msra.mxu0 %v955
    %987 = vmatprep.subr.mxu0 0.0
    %988 = vmatpush1.msra.mxu0 %v956
    %989 = vmatprep.subr.mxu0 0.0
    %990 = vmatpush1.msra.mxu0 %v957
    %991 = vmatprep.subr.mxu0 0.0
    %992 = vmatpush1.msra.mxu0 %v958
    %993 = vmatprep.subr.mxu0 0.0
    %994 = vmatpush1.msra.mxu0 %v959
    %995 = vmatprep.subr.mxu0 0.0
    %996 = vmatpush1.msra.mxu0 %v960
    %997 = vmatprep.subr.mxu0 0.0
    %998 = vmatpush1.msra.mxu0 %v961
    %999 = vmatprep.subr.mxu0 0.0
    %1000 = vmatpush1.msra.mxu0 %v962
    %1001 = vmatprep.subr.mxu0 0.0
    %1002 = vmatpush1.msra.mxu0 %v963
    %1003 = vmatprep.subr.mxu0 0.0
    %1004 = vmatpush1.msra.mxu0 0.0
    %1005 = vmatprep.subr.mxu0 0.0
    %1006 = vmatpush1.msra.mxu0 0.0
    %1007 = vmatprep.subr.mxu0 0.0
    %1008 = vmatpush1.msra.mxu0 0.0
    %1009 = vmatprep.subr.mxu0 0.0
    %1010 = vmatpush1.msra.mxu0 0.0
    %1011 = vmatprep.subr.mxu0 0.0
    %1012 = vmatpush1.msra.mxu0 0.0
    %1013 = vmatprep.subr.mxu0 0.0
    %1014 = vmatpush1.msra.mxu0 0.0
    %1015 = vmatprep.subr.mxu0 0.0
    %1016 = vmatpush1.msra.mxu0 0.0
    %1017 = vmatprep.subr.mxu0 0.0
    %1018 = vmatpush1.msra.mxu0 0.0
    %1019 = vmatprep.subr.mxu0 0.0
    %1020 = vmatpush1.msra.mxu0 0.0
    %1021 = vmatprep.subr.mxu0 0.0
    %1022 = vmatpush1.msra.mxu0 0.0
    %1023 = vmatprep.subr.mxu0 0.0
    %1024 = vmatpush1.msra.mxu0 0.0
    %1025 = vmatprep.subr.mxu0 0.0
    %1026 = vmatpush1.msra.mxu0 0.0
    %1027 = vmatprep.subr.mxu0 0.0
    %1028 = vmatpush1.msra.mxu0 0.0
    %1029 = vmatprep.subr.mxu0 0.0
    %1030 = vmatpush1.msra.mxu0 0.0
    %1031 = vmatprep.subr.mxu0 0.0
    %1032 = vmatpush1.msra.mxu0 0.0
    %1033 = vmatprep.subr.mxu0 0.0
    %1034 = vmatpush1.msra.mxu0 0.0
    %1035 = vmatprep.mubr.f32.mxu0 0.0
    %1036 = vmatmul.mubr.f32.gmra.mrb[0].mxu0 %v947
    %v1037 = vpop.f32.mrb[0].mxu0
    %v1038 = vadd.f32 %v969, %v1037
    %v1039 = vpop.f32.mrb[0].mxu0
    %1040 = vdwg.mxu0
    %v1041 = vlaneseq
    %v1042 = vshrl.u32 %v1041, 7
    %v1043 = vld [vmem:[%s5] sm:$0x1]
    %v1044 = vlaneseq
    %v1045 = vshrl.u32 %v1044, 7
    %v1046 = vsub.s32 0, %v1045
    %v1047 = vrot.slane %v1043, %v1046
    %vm1048 = vcmp.eq.s32.totalorder %v1047, %v1042
    %v1049 = vsel %vm1048, 1, 0
    %v1050 = vcvt.s32.f32 %v1049
    %v1052 = vsel %vm347, %v1050, 0
    %1054 = vmatprep.subr.mxu0 0.0
    %1055 = vmatpush1.msra.mxu0 %v1038
    %1056 = vmatprep.subr.mxu0 0.0
    %1057 = vmatpush1.msra.mxu0 0.0
    %1058 = vmatprep.subr.mxu0 0.0
    %1059 = vmatpush1.msra.mxu0 0.0
    %1060 = vmatprep.subr.mxu0 0.0
    %1061 = vmatpush1.msra.mxu0 0.0
    %1062 = vmatprep.subr.mxu0 0.0
    %1063 = vmatpush1.msra.mxu0 0.0
    %1064 = vmatprep.subr.mxu0 0.0
    %1065 = vmatpush1.msra.mxu0 0.0
    %1066 = vmatprep.subr.mxu0 0.0
    %1067 = vmatpush1.msra.mxu0 0.0
    %1068 = vmatprep.subr.mxu0 0.0
    %1069 = vmatpush1.msra.mxu0 0.0
    %1070 = vmatprep.subr.mxu0 0.0
    %1071 = vmatpush1.msra.mxu0 0.0
    %1072 = vmatprep.subr.mxu0 0.0
    %1073 = vmatpush1.msra.mxu0 0.0
    %1074 = vmatprep.subr.mxu0 0.0
    %1075 = vmatpush1.msra.mxu0 0.0
    %1076 = vmatprep.subr.mxu0 0.0
    %1077 = vmatpush1.msra.mxu0 0.0
    %1078 = vmatprep.subr.mxu0 0.0
    %1079 = vmatpush1.msra.mxu0 0.0
    %1080 = vmatprep.subr.mxu0 0.0
    %1081 = vmatpush1.msra.mxu0 0.0
    %1082 = vmatprep.subr.mxu0 0.0
    %1083 = vmatpush1.msra.mxu0 0.0
    %1084 = vmatprep.subr.mxu0 0.0
    %1085 = vmatpush1.msra.mxu0 0.0
    %1086 = vmatprep.subr.mxu0 0.0
    %1087 = vmatpush1.msra.mxu0 0.0
    %1088 = vmatprep.subr.mxu0 0.0
    %1089 = vmatpush1.msra.mxu0 0.0
    %1090 = vmatprep.subr.mxu0 0.0
    %1091 = vmatpush1.msra.mxu0 0.0
    %1092 = vmatprep.subr.mxu0 0.0
    %1093 = vmatpush1.msra.mxu0 0.0
    %1094 = vmatprep.subr.mxu0 0.0
    %1095 = vmatpush1.msra.mxu0 0.0
    %1096 = vmatprep.subr.mxu0 0.0
    %1097 = vmatpush1.msra.mxu0 0.0
    %1098 = vmatprep.subr.mxu0 0.0
    %1099 = vmatpush1.msra.mxu0 0.0
    %1100 = vmatprep.subr.mxu0 0.0
    %1101 = vmatpush1.msra.mxu0 0.0
    %1102 = vmatprep.subr.mxu0 0.0
    %1103 = vmatpush1.msra.mxu0 0.0
    %1104 = vmatprep.subr.mxu0 0.0
    %1105 = vmatpush1.msra.mxu0 0.0
    %1106 = vmatprep.subr.mxu0 0.0
    %1107 = vmatpush1.msra.mxu0 0.0
    %1108 = vmatprep.subr.mxu0 0.0
    %1109 = vmatpush1.msra.mxu0 0.0
    %1110 = vmatprep.subr.mxu0 0.0
    %1111 = vmatpush1.msra.mxu0 0.0
    %1112 = vmatprep.subr.mxu0 0.0
    %1113 = vmatpush1.msra.mxu0 0.0
    %1114 = vmatprep.subr.mxu0 0.0
    %1115 = vmatpush1.msra.mxu0 0.0
    %1116 = vmatprep.subr.mxu0 0.0
    %1117 = vmatpush1.msra.mxu0 0.0
    %1118 = vmatprep.mubr.f32.mxu0 0.0
    %1119 = vmatmul.mubr.f32.gmra.mrb[0].mxu0 %v1052
    %v1120 = vpop.f32.mrb[0].mxu0
    %v1121 = vadd.f32 0.0, %v1120
    %v1122 = vpop.f32.mrb[0].mxu0
    %1123 = vdwg.mxu0
    %1124 = vst [vmem:[#allocation9] sm:$0x3] %v1121
    // Predicated region
    $region38: #{tpu_custom_call.1} parent=1 // pred_check
      _
    $region39: #{tpu_custom_call.1} parent=1 // pred_check_branch
      %1126 = sbr.rel (0) target = $region41
    $region40: #{tpu_custom_call.1} parent=1 // pred_region
      %s1128 = ssub.s32 32, 32
      %1129 = vsyncadd [#allocation5], %s1128
      %s1131 = sshll.u32 [#allocation9], 4
      %s1132 = int_to_ptr.vmem [resolvable:$true] %s1131
      %1134 = dma.vmem_to_hbm [thread:$0]  %s1132, 32, %s6, [#allocation5]
    $region41: #{tpu_custom_call.1} parent=1 // pred_fallthru
      _
    // Predicated region
    $region42: #{tpu_custom_call.1} parent=1 // pred_check
      _
    $region43: #{tpu_custom_call.1} parent=1 // pred_check_branch
      %1136 = sbr.rel (0) target = $region45
    $region44: #{tpu_custom_call.1} parent=1 // pred_region
      %1137 = dma.done [#allocation5], 32
    $region45: #{tpu_custom_call.1} parent=1 // pred_fallthru
      _
    %1138 = vsyncpa [#allocation4], 1
    %1139 = vsyncpa [#allocation7], 1
    %1140 = vsyncpa [#allocation5], 1

</llo_original>
